<compile_context>
chip_gen: v7x
topology: tpu7x:2x2x1
jax: 0.10.0
libtpu: 0.0.40
codegen_flags: <defaults>
</compile_context>

<pallas_src>
import math
import numpy as np
import jax
import jax.numpy as jnp
from jax import lax
from jax.experimental import pallas as pl
from jax.experimental.pallas import tpu as pltpu


def _make_filter(size, prec):
    # Deterministic fixed filter, exactly as in FixedConv2d.__init__.
    A, B = np.mgrid[0:size[0] + 1, 0:size[1] + 1].astype(np.float64)
    A = A - size[0] / 2
    B = B - size[1] / 2
    f = np.sqrt(A * A + B * B)
    f = np.exp(-f / prec)
    return f  # shape (size[0]+1, size[1]+1)


def fixed_conv2d(x, size=(4, 4), prec=0.5):
    """Pallas implementation of FixedConv2d.forward.

    x: (N, C, H, W). Only channel 0 is used (as in the PyTorch module).
    Returns (N, 1, Ho, Wo) float32.
    """
    f_np = _make_filter(size, prec)
    kh, kw = f_np.shape
    pad = math.floor(kh / 2)

    N, C, H, W = x.shape
    Hp, Wp = H + 2 * pad, W + 2 * pad
    Ho, Wo = Hp - kh + 1, Wp - kw + 1

    # Batch-chunk size: fold as many images per grid step as comfortably fit
    # in VMEM (amortizes per-step DMA/loop overhead). For small shapes this
    # collapses to a single grid step.
    bytes_per_img = 4 * (Hp * Wp + Ho * Wo + H * W)
    nb = max(1, min(N, (4 * 1024 * 1024) // max(bytes_per_img, 1)))
    while N % nb != 0:   # keep the grid exact (no ragged last block)
        nb -= 1

    # Filter taps are compile-time constants (fixed, non-trainable parameter).
    f_const = [[float(f_np[i, j]) for j in range(kw)] for i in range(kh)]
    neg_prec = float(-prec)

    def kernel(x_ref, o_ref, pad_ref):
        # x_ref: (nb, H, W) block (channel dim squeezed by the BlockSpec).
        # pad_ref: (nb, Hp, Wp) VMEM scratch used as the padded canvas.
        # Fused ConstantPad2d(value=1.0) + channel-select + f32 cast.
        pad_ref[...] = jnp.ones((nb, Hp, Wp), jnp.float32)
        pad_ref[:, pad:pad + H, pad:pad + W] = x_ref[...].astype(jnp.float32)
        slab = pad_ref[...]                                  # (nb, Hp, Wp)

        # Column (lane-axis) combine first: kw shifted views shared across
        # all filter rows -> only kh + kw shifted views total (was kh*kw=25).
        cols = [slab[:, :, j:j + Wo] for j in range(kw)]      # (nb, Hp, Wo)
        rows = []
        for i in range(kh):
            s = f_const[i][0] * cols[0]                       # init w/ 1st tap
            for j in range(1, kw):
                s = s + f_const[i][j] * cols[j]
            rows.append(s)                                    # (nb, Hp, Wo)

        # Row (sublane-axis) combine.
        acc = rows[0][:, 0:Ho, :]
        for i in range(1, kh):
            acc = acc + rows[i][:, i:i + Ho, :]

        # Fused epilogue: out = -prec * log(conv)   (log -> EUP slot).
        o_ref[...] = neg_prec * jnp.log(acc)

    out = pl.pallas_call(
        kernel,
        out_shape=jax.ShapeDtypeStruct((N, Ho, Wo), jnp.float32),
        grid=(N // nb,),
        in_specs=[pl.BlockSpec((nb, None, H, W), lambda b: (b, 0, 0, 0))],
        out_specs=pl.BlockSpec((nb, Ho, Wo), lambda b: (b, 0, 0)),
        scratch_shapes=[pltpu.VMEM((nb, Hp, Wp), jnp.float32)],
        compiler_params=pltpu.CompilerParams(
            dimension_semantics=("parallel",)),
    )(x)

    return out[:, None, :, :]  # (N, 1, Ho, Wo)


def _reference(x, size=(4, 4), prec=0.5):
    # Pure-JAX reference mirroring the PyTorch forward (in f32).
    f_np = _make_filter(size, prec).astype(np.float32)
    kh, kw = f_np.shape
    pad = math.floor(kh / 2)
    x0 = x[:, 0:1, :, :].astype(jnp.float32)
    x_pad = jnp.pad(x0, ((0, 0), (0, 0), (pad, pad), (pad, pad)),
                    constant_values=1.0)
    f = jnp.asarray(f_np)[None, None, :, :]  # OIHW
    out = lax.conv_general_dilated(
        x_pad, f, window_strides=(1, 1), padding="VALID",
        dimension_numbers=("NCHW", "OIHW", "NCHW"))
    return -prec * jnp.log(out)


if __name__ == "__main__":
    key = jax.random.PRNGKey(0)
    N, C, H, W = 2, 4, 16, 16
    # Positive inputs so the log is well-defined (distance-transform-like
    # non-negative maps, as the module expects).
    x = jax.random.uniform(key, (N, C, H, W), dtype=jnp.float32,
                           minval=0.05, maxval=1.0)

    out = fixed_conv2d(x, size=(4, 4), prec=0.5)
    out = jax.block_until_ready(out)

    ref = _reference(x, size=(4, 4), prec=0.5)
    assert out.shape == ref.shape, (out.shape, ref.shape)
    np.testing.assert_allclose(np.asarray(out), np.asarray(ref),
                               rtol=1e-4, atol=1e-4)
    print("KERNEL_OK")
</pallas_src>

<mosaic_0001>
module attributes {stable_mosaic.version = 11 : i64} {
  func.func @kernel(%arg0: i32, %arg1: memref<2x1x16x16xf32, #tpu.memory_space<vmem>>, %arg2: memref<2x16x16xf32, #tpu.memory_space<vmem>>, %arg3: memref<2x20x20xf32, #tpu.memory_space<vmem>>) attributes {dimension_semantics = [#tpu.dimension_semantics<parallel>], iteration_bounds = array<i64: 1>, scalar_prefetch = 0 : i64, scratch_operands = 1 : i64, tpu.core_type = #tpu.core_type<tc>, window_params = [{transform_indices = @transform_0, window_bounds = array<i64: 2, 1, 16, 16>}, {transform_indices = @transform_1, window_bounds = array<i64: 2, 16, 16>}]} {
    %cst = arith.constant 1.000000e+00 : f32
    %0 = vector.broadcast %cst : f32 to vector<2x20x20xf32>
    %c0 = arith.constant 0 : index
    %c0_0 = arith.constant 0 : index
    %c0_1 = arith.constant 0 : index
    %1 = vector.load %arg3[%c0, %c0_0, %c0_1] : memref<2x20x20xf32, #tpu.memory_space<vmem>>, vector<2x20x20xf32>
    tpu.vector_store %arg3[%c0, %c0_0, %c0_1], %0 {strides = array<i32>} : memref<2x20x20xf32, #tpu.memory_space<vmem>>, vector<2x20x20xf32>,
    %c0_2 = arith.constant 0 : index
    %c0_3 = arith.constant 0 : index
    %c0_4 = arith.constant 0 : index
    %c0_5 = arith.constant 0 : index
    %2 = vector.load %arg1[%c0_2, %c0_3, %c0_4, %c0_5] : memref<2x1x16x16xf32, #tpu.memory_space<vmem>>, vector<2x1x16x16xf32>
    %3 = vector.shape_cast %2 : vector<2x1x16x16xf32> to vector<2x16x16xf32>
    %c0_6 = arith.constant 0 : index
    %c2 = arith.constant 2 : index
    %c2_7 = arith.constant 2 : index
    %4 = vector.load %arg3[%c0_6, %c2, %c2_7] : memref<2x20x20xf32, #tpu.memory_space<vmem>>, vector<2x16x16xf32>
    tpu.vector_store %arg3[%c0_6, %c2, %c2_7], %3 {strides = array<i32>} : memref<2x20x20xf32, #tpu.memory_space<vmem>>, vector<2x16x16xf32>,
    %c0_8 = arith.constant 0 : index
    %c0_9 = arith.constant 0 : index
    %c0_10 = arith.constant 0 : index
    %5 = vector.load %arg3[%c0_8, %c0_9, %c0_10] : memref<2x20x20xf32, #tpu.memory_space<vmem>>, vector<2x20x20xf32>
    %6 = vector.extract_strided_slice %5 {offsets = [0, 0, 0], sizes = [2, 20, 16], strides = [1, 1, 1]} : vector<2x20x20xf32> to vector<2x20x16xf32>
    %7 = vector.extract_strided_slice %5 {offsets = [0, 0, 1], sizes = [2, 20, 16], strides = [1, 1, 1]} : vector<2x20x20xf32> to vector<2x20x16xf32>
    %8 = vector.extract_strided_slice %5 {offsets = [0, 0, 2], sizes = [2, 20, 16], strides = [1, 1, 1]} : vector<2x20x20xf32> to vector<2x20x16xf32>
    %9 = vector.extract_strided_slice %5 {offsets = [0, 0, 3], sizes = [2, 20, 16], strides = [1, 1, 1]} : vector<2x20x20xf32> to vector<2x20x16xf32>
    %10 = vector.extract_strided_slice %5 {offsets = [0, 0, 4], sizes = [2, 20, 16], strides = [1, 1, 1]} : vector<2x20x20xf32> to vector<2x20x16xf32>
    %cst_11 = arith.constant 0.00349348923 : f32
    %11 = vector.broadcast %cst_11 : f32 to vector<2x20x16xf32>
    %12 = arith.mulf %11, %6 : vector<2x20x16xf32>
    %cst_12 = arith.constant 0.0114228912 : f32
    %13 = vector.broadcast %cst_12 : f32 to vector<2x20x16xf32>
    %14 = arith.mulf %13, %7 : vector<2x20x16xf32>
    %15 = arith.addf %12, %14 : vector<2x20x16xf32>
    %cst_13 = arith.constant 0.0183156393 : f32
    %16 = vector.broadcast %cst_13 : f32 to vector<2x20x16xf32>
    %17 = arith.mulf %16, %8 : vector<2x20x16xf32>
    %18 = arith.addf %15, %17 : vector<2x20x16xf32>
    %cst_14 = arith.constant 0.0114228912 : f32
    %19 = vector.broadcast %cst_14 : f32 to vector<2x20x16xf32>
    %20 = arith.mulf %19, %9 : vector<2x20x16xf32>
    %21 = arith.addf %18, %20 : vector<2x20x16xf32>
    %cst_15 = arith.constant 0.00349348923 : f32
    %22 = vector.broadcast %cst_15 : f32 to vector<2x20x16xf32>
    %23 = arith.mulf %22, %10 : vector<2x20x16xf32>
    %24 = arith.addf %21, %23 : vector<2x20x16xf32>
    %cst_16 = arith.constant 0.0114228912 : f32
    %25 = vector.broadcast %cst_16 : f32 to vector<2x20x16xf32>
    %26 = arith.mulf %25, %6 : vector<2x20x16xf32>
    %cst_17 = arith.constant 0.0591057464 : f32
    %27 = vector.broadcast %cst_17 : f32 to vector<2x20x16xf32>
    %28 = arith.mulf %27, %7 : vector<2x20x16xf32>
    %29 = arith.addf %26, %28 : vector<2x20x16xf32>
    %cst_18 = arith.constant 0.135335281 : f32
    %30 = vector.broadcast %cst_18 : f32 to vector<2x20x16xf32>
    %31 = arith.mulf %30, %8 : vector<2x20x16xf32>
    %32 = arith.addf %29, %31 : vector<2x20x16xf32>
    %cst_19 = arith.constant 0.0591057464 : f32
    %33 = vector.broadcast %cst_19 : f32 to vector<2x20x16xf32>
    %34 = arith.mulf %33, %9 : vector<2x20x16xf32>
    %35 = arith.addf %32, %34 : vector<2x20x16xf32>
    %cst_20 = arith.constant 0.0114228912 : f32
    %36 = vector.broadcast %cst_20 : f32 to vector<2x20x16xf32>
    %37 = arith.mulf %36, %10 : vector<2x20x16xf32>
    %38 = arith.addf %35, %37 : vector<2x20x16xf32>
    %cst_21 = arith.constant 0.0183156393 : f32
    %39 = vector.broadcast %cst_21 : f32 to vector<2x20x16xf32>
    %40 = arith.mulf %39, %6 : vector<2x20x16xf32>
    %cst_22 = arith.constant 0.135335281 : f32
    %41 = vector.broadcast %cst_22 : f32 to vector<2x20x16xf32>
    %42 = arith.mulf %41, %7 : vector<2x20x16xf32>
    %43 = arith.addf %40, %42 : vector<2x20x16xf32>
    %cst_23 = arith.constant 1.000000e+00 : f32
    %44 = vector.broadcast %cst_23 : f32 to vector<2x20x16xf32>
    %45 = arith.mulf %44, %8 : vector<2x20x16xf32>
    %46 = arith.addf %43, %45 : vector<2x20x16xf32>
    %cst_24 = arith.constant 0.135335281 : f32
    %47 = vector.broadcast %cst_24 : f32 to vector<2x20x16xf32>
    %48 = arith.mulf %47, %9 : vector<2x20x16xf32>
    %49 = arith.addf %46, %48 : vector<2x20x16xf32>
    %cst_25 = arith.constant 0.0183156393 : f32
    %50 = vector.broadcast %cst_25 : f32 to vector<2x20x16xf32>
    %51 = arith.mulf %50, %10 : vector<2x20x16xf32>
    %52 = arith.addf %49, %51 : vector<2x20x16xf32>
    %cst_26 = arith.constant 0.0114228912 : f32
    %53 = vector.broadcast %cst_26 : f32 to vector<2x20x16xf32>
    %54 = arith.mulf %53, %6 : vector<2x20x16xf32>
    %cst_27 = arith.constant 0.0591057464 : f32
    %55 = vector.broadcast %cst_27 : f32 to vector<2x20x16xf32>
    %56 = arith.mulf %55, %7 : vector<2x20x16xf32>
    %57 = arith.addf %54, %56 : vector<2x20x16xf32>
    %cst_28 = arith.constant 0.135335281 : f32
    %58 = vector.broadcast %cst_28 : f32 to vector<2x20x16xf32>
    %59 = arith.mulf %58, %8 : vector<2x20x16xf32>
    %60 = arith.addf %57, %59 : vector<2x20x16xf32>
    %cst_29 = arith.constant 0.0591057464 : f32
    %61 = vector.broadcast %cst_29 : f32 to vector<2x20x16xf32>
    %62 = arith.mulf %61, %9 : vector<2x20x16xf32>
    %63 = arith.addf %60, %62 : vector<2x20x16xf32>
    %cst_30 = arith.constant 0.0114228912 : f32
    %64 = vector.broadcast %cst_30 : f32 to vector<2x20x16xf32>
    %65 = arith.mulf %64, %10 : vector<2x20x16xf32>
    %66 = arith.addf %63, %65 : vector<2x20x16xf32>
    %cst_31 = arith.constant 0.00349348923 : f32
    %67 = vector.broadcast %cst_31 : f32 to vector<2x20x16xf32>
    %68 = arith.mulf %67, %6 : vector<2x20x16xf32>
    %cst_32 = arith.constant 0.0114228912 : f32
    %69 = vector.broadcast %cst_32 : f32 to vector<2x20x16xf32>
    %70 = arith.mulf %69, %7 : vector<2x20x16xf32>
    %71 = arith.addf %68, %70 : vector<2x20x16xf32>
    %cst_33 = arith.constant 0.0183156393 : f32
    %72 = vector.broadcast %cst_33 : f32 to vector<2x20x16xf32>
    %73 = arith.mulf %72, %8 : vector<2x20x16xf32>
    %74 = arith.addf %71, %73 : vector<2x20x16xf32>
    %cst_34 = arith.constant 0.0114228912 : f32
    %75 = vector.broadcast %cst_34 : f32 to vector<2x20x16xf32>
    %76 = arith.mulf %75, %9 : vector<2x20x16xf32>
    %77 = arith.addf %74, %76 : vector<2x20x16xf32>
    %cst_35 = arith.constant 0.00349348923 : f32
    %78 = vector.broadcast %cst_35 : f32 to vector<2x20x16xf32>
    %79 = arith.mulf %78, %10 : vector<2x20x16xf32>
    %80 = arith.addf %77, %79 : vector<2x20x16xf32>
    %81 = vector.extract_strided_slice %24 {offsets = [0, 0, 0], sizes = [2, 16, 16], strides = [1, 1, 1]} : vector<2x20x16xf32> to vector<2x16x16xf32>
    %82 = vector.extract_strided_slice %38 {offsets = [0, 1, 0], sizes = [2, 16, 16], strides = [1, 1, 1]} : vector<2x20x16xf32> to vector<2x16x16xf32>
    %83 = arith.addf %81, %82 : vector<2x16x16xf32>
    %84 = vector.extract_strided_slice %52 {offsets = [0, 2, 0], sizes = [2, 16, 16], strides = [1, 1, 1]} : vector<2x20x16xf32> to vector<2x16x16xf32>
    %85 = arith.addf %83, %84 : vector<2x16x16xf32>
    %86 = vector.extract_strided_slice %66 {offsets = [0, 3, 0], sizes = [2, 16, 16], strides = [1, 1, 1]} : vector<2x20x16xf32> to vector<2x16x16xf32>
    %87 = arith.addf %85, %86 : vector<2x16x16xf32>
    %88 = vector.extract_strided_slice %80 {offsets = [0, 4, 0], sizes = [2, 16, 16], strides = [1, 1, 1]} : vector<2x20x16xf32> to vector<2x16x16xf32>
    %89 = arith.addf %87, %88 : vector<2x16x16xf32>
    %90 = math.log %89 : vector<2x16x16xf32>
    %cst_36 = arith.constant -5.000000e-01 : f32
    %91 = vector.broadcast %cst_36 : f32 to vector<2x16x16xf32>
    %92 = arith.mulf %91, %90 : vector<2x16x16xf32>
    %c0_37 = arith.constant 0 : index
    %c0_38 = arith.constant 0 : index
    %c0_39 = arith.constant 0 : index
    %93 = vector.load %arg2[%c0_37, %c0_38, %c0_39] : memref<2x16x16xf32, #tpu.memory_space<vmem>>, vector<2x16x16xf32>
    tpu.vector_store %arg2[%c0_37, %c0_38, %c0_39], %92 {strides = array<i32>} : memref<2x16x16xf32, #tpu.memory_space<vmem>>, vector<2x16x16xf32>,
    return
  }
  func.func @transform_0(%arg0: i32) -> (i32, i32, i32, i32) {
    %c0_i32 = arith.constant 0 : i32
    %c0_i32_0 = arith.constant 0 : i32
    %c0_i32_1 = arith.constant 0 : i32
    %c0_i32_2 = arith.constant 0 : i32
    return %arg0, %c0_i32, %c0_i32_0, %c0_i32_1 : i32, i32, i32, i32
  }
  func.func @transform_1(%arg0: i32) -> (i32, i32, i32) {
    %c0_i32 = arith.constant 0 : i32
    %c0_i32_0 = arith.constant 0 : i32
    %c0_i32_1 = arith.constant 0 : i32
    return %arg0, %c0_i32, %c0_i32_0 : i32, i32, i32
  }
}

</mosaic_0001>

<llo_original>
// kernel: tpu_custom_call.1
$region0: #{tpu_custom_call.1}
  #allocation0 [shape = 'u32[]', space=smem, size = 0x4, offset = 0x4, fixed_abs, tag = 'smem constant byte address 0x4 - core index']
  #allocation1 [shape = 'u32[144,128]{1,0:T(1,128)}', space=vmem, size = 0x12000, scoped, tag = 'internal scratch']
  #allocation2 [shape = 'f32[2,20,20]{2,1,0:T(8,128)}', space=vmem, size = 0x6000, scoped, tag = 'scratch operand']
  #allocation7 [shape = 's32[]', space=sflag, size = 0x4, offset = 0, fixed_abs, tag = 'sflag constant byte address 0x0 - dummy sync flag']
  %s0 = inlined_call_operand.hbm [shape: f32[2,4,16,16], index: 0, kind: input, shape index: {}]
  %s1 = inlined_call_operand.hbm [shape: f32[2,16,16], index: 1, kind: output, shape index: {}]
  %s2 = sld [smem:[#allocation0]]
  $region18: #{tpu_custom_call.1} parent=0
    _
  %s4 = ssub.s32 1, %s2
  %s5 = scalar_select 0, %s4, %s2
  $region1: #{tpu_custom_call.1} parent=0
    #allocation3 [shape = 'u8[16384]{0}', space=vmem, size = 0x4000, scoped, tag = 'input window, operand 0, single buffered']
    #allocation4 [shape = 's32[1]{0}', space=sflag, size = 0x4, scoped, tag = 'scoped memory for tpu_custom_call.1']
    #allocation5 [shape = 's32[1]{0}', space=sflag, size = 0x4, scoped, tag = 'scoped memory for tpu_custom_call.1']
    #allocation6 [shape = 'u8[16384]{0}', space=vmem, size = 0x4000, scoped, tag = 'output window, operand 0, single buffered']
    %6 = vsyncpa [#allocation4], 0
    %7 = vsyncpa [#allocation5], 0
    // Predicated region
    $region2: #{tpu_custom_call.1} parent=1 // pred_check
      _
    $region3: #{tpu_custom_call.1} parent=1 // pred_check_branch
      %9 = sbr.rel (0) target = $region5
    $region4: #{tpu_custom_call.1} parent=1 // pred_region
      #allocation8 [shape = 'u32[6]{0}', space=smem, size = 0x18, scoped, tag = 'DMA stride descriptor']
      %s11 = ssub.s32 512, 512
      %12 = vsyncadd [#allocation4], %s11
      %s14 = sshll.u32 1, 14
      %s15 = sxor.u32 4294967295, %s14
      %s17 = sld [smem:[#allocation0]]
      %s18 = sadd.s32 2, %s17
      %s20 = sshll.u32 7, 26
      %s21 = sxor.u32 4294967295, %s20
      %s22 = sand.u32 0, %s21
      %s23 = sshll.u32 %s18, 26
      %s24 = sor.u32 %s22, %s23
      %s25 = sshll.u32 [#allocation3], 4
      %s26 = int_to_ptr.vmem [resolvable:$true] %s25
      %32 = sst [smem:[#allocation8]] 1024
      %s33 = scalar_lea.smem [#allocation8], 1
      %34 = sst [smem:[%s33]] 256
      %s35 = scalar_lea.smem [#allocation8], 2
      %36 = sst [smem:[%s35]] 2
      %s37 = scalar_lea.smem [#allocation8], 3
      %38 = sst [smem:[%s37]] 128
      %s39 = scalar_lea.smem [#allocation8], 4
      %40 = sst [smem:[%s39]] 128
      %s41 = scalar_lea.smem [#allocation8], 5
      %42 = sst [smem:[%s41]] 8
      %44 = dma.general %s0, 512, %s26, [#allocation4], [#allocation7], [#allocation8], %s24, 0
    $region5: #{tpu_custom_call.1} parent=1 // pred_fallthru
      _
    // Predicated region
    $region6: #{tpu_custom_call.1} parent=1 // pred_check
      _
    $region7: #{tpu_custom_call.1} parent=1 // pred_check_branch
      %46 = sbr.rel (0) target = $region9
    $region8: #{tpu_custom_call.1} parent=1 // pred_region
      %47 = dma.done [#allocation4], 512
    $region9: #{tpu_custom_call.1} parent=1 // pred_fallthru
      _
    %vm48 = vcmask 162816
    %49 = vst.msk [vmem:[#allocation2] sm:$0xff] %vm48, 1.0
    %50 = vst.msk [vmem:[#allocation2 + $0x8] sm:$0xff] %vm48, 1.0
    %vm51 = vcmask 158720
    %52 = vst.msk [vmem:[#allocation2 + $0x10] sm:$0xf] %vm51, 1.0
    %53 = vst.msk [vmem:[#allocation2 + $0x18] sm:$0xff] %vm48, 1.0
    %54 = vst.msk [vmem:[#allocation2 + $0x20] sm:$0xff] %vm48, 1.0
    %55 = vst.msk [vmem:[#allocation2 + $0x28] sm:$0xf] %vm51, 1.0
    %v56 = vld [vmem:[#allocation3] sm:$0xff]
    %v57 = vld [vmem:[#allocation3 + $0x8] sm:$0xff]
    %v58 = vld [vmem:[#allocation3 + $0x10] sm:$0xff]
    %v59 = vld [vmem:[#allocation3 + $0x18] sm:$0xff]
    %64 = vrot.lane.b32.xlu0 %v56, 2
    %v65 = vpop.permute.xlu0 %64
    %66 = vrot.lane.b32.xlu0 %v57, 2
    %v67 = vpop.permute.xlu0 %66
    %68 = vrot.lane.b32.xlu0 %v58, 2
    %v69 = vpop.permute.xlu0 %68
    %70 = vrot.lane.b32.xlu0 %v59, 2
    %v71 = vpop.permute.xlu0 %70
    %vm76 = vcmask 146448
    %77 = vst.msk [vmem:[#allocation2 + $0x2] sm:$0xff] %vm76, %v65
    %78 = vst.msk [vmem:[#allocation2 + $0xa] sm:$0xff] %vm76, %v67
    %79 = vst.msk [vmem:[#allocation2 + $0x1a] sm:$0xff] %vm76, %v69
    %80 = vst.msk [vmem:[#allocation2 + $0x22] sm:$0xff] %vm76, %v71
    %v81 = vld [vmem:[#allocation2] sm:$0xff]
    %v82 = vld [vmem:[#allocation2 + $0x8] sm:$0xff]
    %v83 = vld [vmem:[#allocation2 + $0x10] sm:$0xf]
    %v84 = vld [vmem:[#allocation2 + $0x18] sm:$0xff]
    %v85 = vld [vmem:[#allocation2 + $0x20] sm:$0xff]
    %v86 = vld [vmem:[#allocation2 + $0x28] sm:$0xf]
    %v87 = vmul.f32 %v81, 0.0034934892
    %v88 = vmul.f32 %v82, 0.0034934892
    %v89 = vmul.f32 %v83, 0.0034934892
    %v90 = vmul.f32 %v84, 0.0034934892
    %v91 = vmul.f32 %v85, 0.0034934892
    %v92 = vmul.f32 %v86, 0.0034934892
    %v93 = vmul.f32 %v81, 0.011422891
    %v94 = vmul.f32 %v82, 0.011422891
    %v95 = vmul.f32 %v83, 0.011422891
    %v96 = vmul.f32 %v84, 0.011422891
    %v97 = vmul.f32 %v85, 0.011422891
    %v98 = vmul.f32 %v86, 0.011422891
    %105 = vrot.lane.b32.xlu0 %v93, 127
    %v106 = vpop.permute.xlu0 %105
    %107 = vrot.lane.b32.xlu0 %v94, 127
    %v108 = vpop.permute.xlu0 %107
    %109 = vrot.lane.b32.xlu0 %v95, 127
    %v110 = vpop.permute.xlu0 %109
    %111 = vrot.lane.b32.xlu0 %v96, 127
    %v112 = vpop.permute.xlu0 %111
    %113 = vrot.lane.b32.xlu0 %v97, 127
    %v114 = vpop.permute.xlu0 %113
    %115 = vrot.lane.b32.xlu0 %v98, 127
    %v116 = vpop.permute.xlu0 %115
    %v123 = vadd.f32 %v87, %v106
    %v124 = vadd.f32 %v88, %v108
    %v125 = vadd.f32 %v89, %v110
    %v126 = vadd.f32 %v90, %v112
    %v127 = vadd.f32 %v91, %v114
    %v128 = vadd.f32 %v92, %v116
    %v129 = vmul.f32 %v81, 0.01831564
    %v130 = vmul.f32 %v82, 0.01831564
    %v131 = vmul.f32 %v83, 0.01831564
    %v132 = vmul.f32 %v84, 0.01831564
    %v133 = vmul.f32 %v85, 0.01831564
    %v134 = vmul.f32 %v86, 0.01831564
    %141 = vrot.lane.b32.xlu0 %v129, 126
    %v142 = vpop.permute.xlu0 %141
    %143 = vrot.lane.b32.xlu0 %v130, 126
    %v144 = vpop.permute.xlu0 %143
    %145 = vrot.lane.b32.xlu0 %v131, 126
    %v146 = vpop.permute.xlu0 %145
    %147 = vrot.lane.b32.xlu0 %v132, 126
    %v148 = vpop.permute.xlu0 %147
    %149 = vrot.lane.b32.xlu0 %v133, 126
    %v150 = vpop.permute.xlu0 %149
    %151 = vrot.lane.b32.xlu0 %v134, 126
    %v152 = vpop.permute.xlu0 %151
    %v159 = vadd.f32 %v123, %v142
    %v160 = vadd.f32 %v124, %v144
    %v161 = vadd.f32 %v125, %v146
    %v162 = vadd.f32 %v126, %v148
    %v163 = vadd.f32 %v127, %v150
    %v164 = vadd.f32 %v128, %v152
    %165 = vrot.lane.b32.xlu0 %v93, 125
    %v166 = vpop.permute.xlu0 %165
    %167 = vrot.lane.b32.xlu0 %v94, 125
    %v168 = vpop.permute.xlu0 %167
    %169 = vrot.lane.b32.xlu0 %v95, 125
    %v170 = vpop.permute.xlu0 %169
    %171 = vrot.lane.b32.xlu0 %v96, 125
    %v172 = vpop.permute.xlu0 %171
    %173 = vrot.lane.b32.xlu0 %v97, 125
    %v174 = vpop.permute.xlu0 %173
    %175 = vrot.lane.b32.xlu0 %v98, 125
    %v176 = vpop.permute.xlu0 %175
    %v183 = vadd.f32 %v159, %v166
    %v184 = vadd.f32 %v160, %v168
    %v185 = vadd.f32 %v161, %v170
    %v186 = vadd.f32 %v162, %v172
    %v187 = vadd.f32 %v163, %v174
    %v188 = vadd.f32 %v164, %v176
    %195 = vrot.lane.b32.xlu0 %v87, 124
    %v196 = vpop.permute.xlu0 %195
    %197 = vrot.lane.b32.xlu0 %v88, 124
    %v198 = vpop.permute.xlu0 %197
    %199 = vrot.lane.b32.xlu0 %v89, 124
    %v200 = vpop.permute.xlu0 %199
    %201 = vrot.lane.b32.xlu0 %v90, 124
    %v202 = vpop.permute.xlu0 %201
    %203 = vrot.lane.b32.xlu0 %v91, 124
    %v204 = vpop.permute.xlu0 %203
    %205 = vrot.lane.b32.xlu0 %v92, 124
    %v206 = vpop.permute.xlu0 %205
    %v213 = vadd.f32 %v183, %v196
    %v214 = vadd.f32 %v184, %v198
    %v215 = vadd.f32 %v185, %v200
    %v216 = vadd.f32 %v186, %v202
    %v217 = vadd.f32 %v187, %v204
    %v218 = vadd.f32 %v188, %v206
    %v219 = vmul.f32 %v81, 0.059105746
    %v220 = vmul.f32 %v82, 0.059105746
    %v221 = vmul.f32 %v83, 0.059105746
    %v222 = vmul.f32 %v84, 0.059105746
    %v223 = vmul.f32 %v85, 0.059105746
    %v224 = vmul.f32 %v86, 0.059105746
    %231 = vrot.lane.b32.xlu0 %v219, 127
    %v232 = vpop.permute.xlu0 %231
    %233 = vrot.lane.b32.xlu0 %v220, 127
    %v234 = vpop.permute.xlu0 %233
    %235 = vrot.lane.b32.xlu0 %v221, 127
    %v236 = vpop.permute.xlu0 %235
    %237 = vrot.lane.b32.xlu0 %v222, 127
    %v238 = vpop.permute.xlu0 %237
    %239 = vrot.lane.b32.xlu0 %v223, 127
    %v240 = vpop.permute.xlu0 %239
    %241 = vrot.lane.b32.xlu0 %v224, 127
    %v242 = vpop.permute.xlu0 %241
    %v249 = vadd.f32 %v93, %v232
    %v250 = vadd.f32 %v94, %v234
    %v251 = vadd.f32 %v95, %v236
    %v252 = vadd.f32 %v96, %v238
    %v253 = vadd.f32 %v97, %v240
    %v254 = vadd.f32 %v98, %v242
    %v255 = vmul.f32 %v81, 0.13533528
    %v256 = vmul.f32 %v82, 0.13533528
    %v257 = vmul.f32 %v83, 0.13533528
    %v258 = vmul.f32 %v84, 0.13533528
    %v259 = vmul.f32 %v85, 0.13533528
    %v260 = vmul.f32 %v86, 0.13533528
    %267 = vrot.lane.b32.xlu0 %v255, 126
    %v268 = vpop.permute.xlu0 %267
    %269 = vrot.lane.b32.xlu0 %v256, 126
    %v270 = vpop.permute.xlu0 %269
    %271 = vrot.lane.b32.xlu0 %v257, 126
    %v272 = vpop.permute.xlu0 %271
    %273 = vrot.lane.b32.xlu0 %v258, 126
    %v274 = vpop.permute.xlu0 %273
    %275 = vrot.lane.b32.xlu0 %v259, 126
    %v276 = vpop.permute.xlu0 %275
    %277 = vrot.lane.b32.xlu0 %v260, 126
    %v278 = vpop.permute.xlu0 %277
    %v285 = vadd.f32 %v249, %v268
    %v286 = vadd.f32 %v250, %v270
    %v287 = vadd.f32 %v251, %v272
    %v288 = vadd.f32 %v252, %v274
    %v289 = vadd.f32 %v253, %v276
    %v290 = vadd.f32 %v254, %v278
    %291 = vrot.lane.b32.xlu0 %v219, 125
    %v292 = vpop.permute.xlu0 %291
    %293 = vrot.lane.b32.xlu0 %v220, 125
    %v294 = vpop.permute.xlu0 %293
    %295 = vrot.lane.b32.xlu0 %v221, 125
    %v296 = vpop.permute.xlu0 %295
    %297 = vrot.lane.b32.xlu0 %v222, 125
    %v298 = vpop.permute.xlu0 %297
    %299 = vrot.lane.b32.xlu0 %v223, 125
    %v300 = vpop.permute.xlu0 %299
    %301 = vrot.lane.b32.xlu0 %v224, 125
    %v302 = vpop.permute.xlu0 %301
    %v309 = vadd.f32 %v285, %v292
    %v310 = vadd.f32 %v286, %v294
    %v311 = vadd.f32 %v287, %v296
    %v312 = vadd.f32 %v288, %v298
    %v313 = vadd.f32 %v289, %v300
    %v314 = vadd.f32 %v290, %v302
    %315 = vrot.lane.b32.xlu0 %v93, 124
    %v316 = vpop.permute.xlu0 %315
    %317 = vrot.lane.b32.xlu0 %v94, 124
    %v318 = vpop.permute.xlu0 %317
    %319 = vrot.lane.b32.xlu0 %v95, 124
    %v320 = vpop.permute.xlu0 %319
    %321 = vrot.lane.b32.xlu0 %v96, 124
    %v322 = vpop.permute.xlu0 %321
    %323 = vrot.lane.b32.xlu0 %v97, 124
    %v324 = vpop.permute.xlu0 %323
    %325 = vrot.lane.b32.xlu0 %v98, 124
    %v326 = vpop.permute.xlu0 %325
    %v333 = vadd.f32 %v309, %v316
    %v334 = vadd.f32 %v310, %v318
    %v335 = vadd.f32 %v311, %v320
    %v336 = vadd.f32 %v312, %v322
    %v337 = vadd.f32 %v313, %v324
    %v338 = vadd.f32 %v314, %v326
    %339 = vrot.lane.b32.xlu0 %v255, 127
    %v340 = vpop.permute.xlu0 %339
    %341 = vrot.lane.b32.xlu0 %v256, 127
    %v342 = vpop.permute.xlu0 %341
    %343 = vrot.lane.b32.xlu0 %v257, 127
    %v344 = vpop.permute.xlu0 %343
    %345 = vrot.lane.b32.xlu0 %v258, 127
    %v346 = vpop.permute.xlu0 %345
    %347 = vrot.lane.b32.xlu0 %v259, 127
    %v348 = vpop.permute.xlu0 %347
    %349 = vrot.lane.b32.xlu0 %v260, 127
    %v350 = vpop.permute.xlu0 %349
    %v357 = vadd.f32 %v129, %v340
    %v358 = vadd.f32 %v130, %v342
    %v359 = vadd.f32 %v131, %v344
    %v360 = vadd.f32 %v132, %v346
    %v361 = vadd.f32 %v133, %v348
    %v362 = vadd.f32 %v134, %v350
    %369 = vrot.lane.b32.xlu0 %v81, 126
    %v370 = vpop.permute.xlu0 %369
    %371 = vrot.lane.b32.xlu0 %v82, 126
    %v372 = vpop.permute.xlu0 %371
    %373 = vrot.lane.b32.xlu0 %v83, 126
    %v374 = vpop.permute.xlu0 %373
    %375 = vrot.lane.b32.xlu0 %v84, 126
    %v376 = vpop.permute.xlu0 %375
    %377 = vrot.lane.b32.xlu0 %v85, 126
    %v378 = vpop.permute.xlu0 %377
    %379 = vrot.lane.b32.xlu0 %v86, 126
    %v380 = vpop.permute.xlu0 %379
    %v387 = vadd.f32 %v357, %v370
    %v388 = vadd.f32 %v358, %v372
    %v389 = vadd.f32 %v359, %v374
    %v390 = vadd.f32 %v360, %v376
    %v391 = vadd.f32 %v361, %v378
    %v392 = vadd.f32 %v362, %v380
    %393 = vrot.lane.b32.xlu0 %v255, 125
    %v394 = vpop.permute.xlu0 %393
    %395 = vrot.lane.b32.xlu0 %v256, 125
    %v396 = vpop.permute.xlu0 %395
    %397 = vrot.lane.b32.xlu0 %v257, 125
    %v398 = vpop.permute.xlu0 %397
    %399 = vrot.lane.b32.xlu0 %v258, 125
    %v400 = vpop.permute.xlu0 %399
    %401 = vrot.lane.b32.xlu0 %v259, 125
    %v402 = vpop.permute.xlu0 %401
    %403 = vrot.lane.b32.xlu0 %v260, 125
    %v404 = vpop.permute.xlu0 %403
    %v411 = vadd.f32 %v387, %v394
    %v412 = vadd.f32 %v388, %v396
    %v413 = vadd.f32 %v389, %v398
    %v414 = vadd.f32 %v390, %v400
    %v415 = vadd.f32 %v391, %v402
    %v416 = vadd.f32 %v392, %v404
    %417 = vrot.lane.b32.xlu0 %v129, 124
    %v418 = vpop.permute.xlu0 %417
    %419 = vrot.lane.b32.xlu0 %v130, 124
    %v420 = vpop.permute.xlu0 %419
    %421 = vrot.lane.b32.xlu0 %v131, 124
    %v422 = vpop.permute.xlu0 %421
    %423 = vrot.lane.b32.xlu0 %v132, 124
    %v424 = vpop.permute.xlu0 %423
    %425 = vrot.lane.b32.xlu0 %v133, 124
    %v426 = vpop.permute.xlu0 %425
    %427 = vrot.lane.b32.xlu0 %v134, 124
    %v428 = vpop.permute.xlu0 %427
    %v435 = vadd.f32 %v411, %v418
    %v436 = vadd.f32 %v412, %v420
    %v437 = vadd.f32 %v413, %v422
    %v438 = vadd.f32 %v414, %v424
    %v439 = vadd.f32 %v415, %v426
    %v440 = vadd.f32 %v416, %v428
    %vm447 = vcmask 1046528
    %v448 = vrot.slane %v333, 1
    %v449 = vrot.slane %v334, 1
    %v450 = vsel %vm447, %v448, %v449
    %v451 = vrot.slane %v335, 1
    %v452 = vsel %vm447, %v449, %v451
    %v453 = vrot.slane %v336, 1
    %v454 = vrot.slane %v337, 1
    %v455 = vsel %vm447, %v453, %v454
    %v456 = vrot.slane %v338, 1
    %v457 = vsel %vm447, %v454, %v456
    %v462 = vadd.f32 %v213, %v450
    %v463 = vadd.f32 %v214, %v452
    %v464 = vadd.f32 %v216, %v455
    %v465 = vadd.f32 %v217, %v457
    %vm472 = vcmask 1045504
    %v473 = vrot.slane %v435, 2
    %v474 = vrot.slane %v436, 2
    %v475 = vsel %vm472, %v473, %v474
    %v476 = vrot.slane %v437, 2
    %v477 = vsel %vm472, %v474, %v476
    %v478 = vrot.slane %v438, 2
    %v479 = vrot.slane %v439, 2
    %v480 = vsel %vm472, %v478, %v479
    %v481 = vrot.slane %v440, 2
    %v482 = vsel %vm472, %v479, %v481
    %v487 = vadd.f32 %v462, %v475
    %v488 = vadd.f32 %v463, %v477
    %v489 = vadd.f32 %v464, %v480
    %v490 = vadd.f32 %v465, %v482
    %vm491 = vcmask 1044480
    %v492 = vrot.slane %v333, 3
    %v493 = vrot.slane %v334, 3
    %v494 = vsel %vm491, %v492, %v493
    %v495 = vrot.slane %v335, 3
    %v496 = vsel %vm491, %v493, %v495
    %v497 = vrot.slane %v336, 3
    %v498 = vrot.slane %v337, 3
    %v499 = vsel %vm491, %v497, %v498
    %v500 = vrot.slane %v338, 3
    %v501 = vsel %vm491, %v498, %v500
    %v506 = vadd.f32 %v487, %v494
    %v507 = vadd.f32 %v488, %v496
    %v508 = vadd.f32 %v489, %v499
    %v509 = vadd.f32 %v490, %v501
    %vm516 = vcmask 1043456
    %v517 = vrot.slane %v213, 4
    %v518 = vrot.slane %v214, 4
    %v519 = vsel %vm516, %v517, %v518
    %v520 = vrot.slane %v215, 4
    %v521 = vsel %vm516, %v518, %v520
    %v522 = vrot.slane %v216, 4
    %v523 = vrot.slane %v217, 4
    %v524 = vsel %vm516, %v522, %v523
    %v525 = vrot.slane %v218, 4
    %v526 = vsel %vm516, %v523, %v525
    %v531 = vadd.f32 %v506, %v519
    %v532 = vadd.f32 %v507, %v521
    %v533 = vadd.f32 %v508, %v524
    %v534 = vadd.f32 %v509, %v526
    %v535 = vlog2.pop %v531
    %v536 = vmul.f32 %v535, 0.6931472
    %v537 = vlog2.pop %v532
    %v538 = vmul.f32 %v537, 0.6931472
    %v539 = vlog2.pop %v533
    %v540 = vmul.f32 %v539, 0.6931472
    %v541 = vlog2.pop %v534
    %v542 = vmul.f32 %v541, 0.6931472
    %v543 = vmul.f32 %v536, -0.5
    %v544 = vmul.f32 %v538, -0.5
    %v545 = vmul.f32 %v540, -0.5
    %v546 = vmul.f32 %v542, -0.5
    %vm547 = vcmask 130048
    %548 = vst.msk [vmem:[#allocation6] sm:$0xff] %vm547, %v543
    %549 = vst.msk [vmem:[#allocation6 + $0x8] sm:$0xff] %vm547, %v544
    %550 = vst.msk [vmem:[#allocation6 + $0x10] sm:$0xff] %vm547, %v545
    %551 = vst.msk [vmem:[#allocation6 + $0x18] sm:$0xff] %vm547, %v546
    // Predicated region
    $region10: #{tpu_custom_call.1} parent=1 // pred_check
      _
    $region11: #{tpu_custom_call.1} parent=1 // pred_check_branch
      %553 = sbr.rel (0) target = $region13
    $region12: #{tpu_custom_call.1} parent=1 // pred_region
      %s555 = ssub.s32 512, 512
      %556 = vsyncadd [#allocation5], %s555
      %s557 = sshll.u32 [#allocation6], 4
      %s558 = int_to_ptr.vmem [resolvable:$true] %s557
      %563 = dma.vmem_to_hbm [thread:$0]  %s558, 512, %s1, [#allocation5], 128, 128, 8
    $region13: #{tpu_custom_call.1} parent=1 // pred_fallthru
      _
    // Predicated region
    $region14: #{tpu_custom_call.1} parent=1 // pred_check
      _
    $region15: #{tpu_custom_call.1} parent=1 // pred_check_branch
      %565 = sbr.rel (0) target = $region17
    $region16: #{tpu_custom_call.1} parent=1 // pred_region
      %566 = dma.done [#allocation5], 512
    $region17: #{tpu_custom_call.1} parent=1 // pred_fallthru
      _
    %567 = vsyncpa [#allocation4], 1
    %568 = vsyncpa [#allocation5], 1

</llo_original>
